<compile_context>
chip_gen: v7x
topology: tpu7x:2x2x1
jax: 0.10.0
libtpu: 0.0.40
codegen_flags: <defaults>
</compile_context>

<pallas_src>
import functools

import jax
import jax.numpy as jnp
from jax.experimental import pallas as pl
from jax.experimental.pallas import tpu as pltpu


def _round_up(a: int, b: int) -> int:
    return -(-a // b) * b


def highway_kernel(x_ref, w_ref, b_ref, o_ref):
    # x_ref: (TM, Dp)        tile of flattened (batch*seq) rows
    # w_ref: (L, Dp, 2*Dp)   fused weights, (in, out) layout:
    #                        [:, :, :Dp] = gate-list W^T (relu path)
    #                        [:, :, Dp:] = proj-list W^T (sigmoid path)
    # b_ref: (L, 1, 2*Dp)    fused biases (float32)
    # o_ref: (TM, Dp)
    d = o_ref.shape[-1]
    n_layers = w_ref.shape[0]
    in_dtype = x_ref.dtype

    x_in = x_ref[...]                         # MXU operand in native dtype
    x_f32 = x_in.astype(jnp.float32)          # residual path kept in f32
    for l in range(n_layers):                 # static & small (n_layers=2) -> unrolled
        # One fused (TM, Dp) x (Dp, 2*Dp) matmul per layer, f32 accumulation.
        y = jnp.dot(x_in, w_ref[l], preferred_element_type=jnp.float32)
        y = y + b_ref[l].astype(jnp.float32)
        proj = jnp.maximum(y[:, :d], 0.0)     # relu(gate-list linear)   (PyTorch zip swap)
        gate = jax.nn.sigmoid(y[:, d:])       # sigmoid(proj-list linear)
        x_f32 = x_f32 + gate * (proj - x_f32)       # highway combine (1 fewer vmul/vsub)
        x_in = x_f32.astype(in_dtype)               # operand for the next layer's matmul
    o_ref[...] = x_f32.astype(o_ref.dtype)


@functools.partial(jax.jit, static_argnames=("tile_rows", "single_buffer_weights"))
def _highway_fwd(x, w_gate, b_gate, w_proj, b_proj, *, tile_rows, single_buffer_weights):
    B, S, D = x.shape
    L = w_gate.shape[0]
    BS = B * S

    Dp = _round_up(D, 128)                       # lane-dense feature dim
    tm = _round_up(min(tile_rows, _round_up(BS, 8)), 8)   # row tile (>=8 sublanes)
    BSp = _round_up(BS, tm)                      # pad rows to a tile multiple
    pad_d = Dp - D

    # ---- parameter prep (under the same jit; fused by XLA, not a hot-path pass) ----
    # PyTorch Linear: y = x @ W.T + b  ->  pre-transpose to (in, out) layout.
    wg_t = jnp.pad(jnp.transpose(w_gate, (0, 2, 1)), ((0, 0), (0, pad_d), (0, pad_d)))
    wp_t = jnp.pad(jnp.transpose(w_proj, (0, 2, 1)), ((0, 0), (0, pad_d), (0, pad_d)))
    w_cat = jnp.concatenate([wg_t, wp_t], axis=-1).astype(x.dtype)       # (L, Dp, 2*Dp)
    b_cat = jnp.concatenate(
        [jnp.pad(b_gate, ((0, 0), (0, pad_d))),
         jnp.pad(b_proj, ((0, 0), (0, pad_d)))], axis=-1,
    ).astype(jnp.float32).reshape(L, 1, 2 * Dp)                          # (L, 1, 2*Dp)

    x2d = jnp.pad(x.reshape(BS, D), ((0, BSp - BS), (0, pad_d)))         # (BSp, Dp)

    # Grid-invariant params: single-buffer them when pipeline_mode is available.
    if single_buffer_weights and hasattr(pl, "Buffered"):
        def w_spec(shape):
            return pl.BlockSpec(shape, lambda i: (0,) * len(shape),
                                pipeline_mode=pl.Buffered(buffer_count=1))
    else:
        def w_spec(shape):
            return pl.BlockSpec(shape, lambda i: (0,) * len(shape))

    grid = (BSp // tm,)
    out2d = pl.pallas_call(
        highway_kernel,
        out_shape=jax.ShapeDtypeStruct((BSp, Dp), x.dtype),
        grid_spec=pltpu.PrefetchScalarGridSpec(
            num_scalar_prefetch=0,
            grid=grid,
            in_specs=[
                pl.BlockSpec((tm, Dp), lambda i: (i, 0)),   # x row tile (pipelined)
                w_spec((L, Dp, 2 * Dp)),                    # fused W (grid-invariant)
                w_spec((L, 1, 2 * Dp)),                     # fused b (grid-invariant)
            ],
            out_specs=pl.BlockSpec((tm, Dp), lambda i: (i, 0)),
        ),
        compiler_params=pltpu.CompilerParams(
            # Row axis is embarrassingly parallel -> megacore split on v7x,
            # neutral on single-TC v5e/v6e.
            dimension_semantics=("parallel",),
        ),
    )(x2d, w_cat, b_cat)

    return out2d[:BS, :D].reshape(B, S, D)


def highway_pallas(x, w_gate, b_gate, w_proj, b_proj, *, tile_rows=256):
    """x: (B, S, D). w_*: (L, D, D) in PyTorch (out, in) layout. b_*: (L, D)."""
    try:
        out = _highway_fwd(x, w_gate, b_gate, w_proj, b_proj,
                           tile_rows=tile_rows, single_buffer_weights=True)
        return jax.block_until_ready(out)
    except Exception:
        # Older jax (no BlockSpec pipeline_mode) or lowering rejects Buffered(1):
        # fall back to default double-buffered weight specs.
        out = _highway_fwd(x, w_gate, b_gate, w_proj, b_proj,
                           tile_rows=tile_rows, single_buffer_weights=False)
        return jax.block_until_ready(out)


def highway_ref(x, w_gate, b_gate, w_proj, b_proj):
    """Pure-JAX reference matching the PyTorch forward exactly (incl. the zip swap)."""
    L = w_gate.shape[0]
    for l in range(L):
        proj = jax.nn.relu(x @ w_gate[l].T + b_gate[l])
        gate = jax.nn.sigmoid(x @ w_proj[l].T + b_proj[l])
        x = proj * gate + x * (1.0 - gate)
    return x


if __name__ == "__main__":
    # Small shapes consistent with the module's forward: (batch, seq, d_highway)
    B, S, D, L = 2, 8, 32, 2
    keys = jax.random.split(jax.random.PRNGKey(0), 11)

    x = jax.random.normal(keys[0], (B, S, D), dtype=jnp.float32)
    bound = 1.0 / (D ** 0.5)
    w_gate = jax.random.uniform(keys[1], (L, D, D), jnp.float32, -bound, bound)
    b_gate = jax.random.uniform(keys[2], (L, D), jnp.float32, -bound, bound)
    w_proj = jax.random.uniform(keys[3], (L, D, D), jnp.float32, -bound, bound)
    b_proj = jax.random.uniform(keys[4], (L, D), jnp.float32, -bound, bound)

    out = highway_pallas(x, w_gate, b_gate, w_proj, b_proj)
    out = jax.block_until_ready(out)
    ref = highway_ref(x, w_gate, b_gate, w_proj, b_proj)
    assert out.shape == (B, S, D)
    assert jnp.allclose(out, ref, atol=1e-5, rtol=1e-5), "mismatch vs reference (small)"

    # Second check: exercises row padding (B*S not a tile multiple), lane padding
    # (D not a multiple of 128) and a multi-step grid.
    B2, S2, D2 = 4, 96, 96
    bound2 = 1.0 / (D2 ** 0.5)
    x2 = jax.random.normal(keys[5], (B2, S2, D2), dtype=jnp.float32)
    wg2 = jax.random.uniform(keys[6], (L, D2, D2), jnp.float32, -bound2, bound2)
    bg2 = jax.random.uniform(keys[7], (L, D2), jnp.float32, -bound2, bound2)
    wp2 = jax.random.uniform(keys[8], (L, D2, D2), jnp.float32, -bound2, bound2)
    bp2 = jax.random.uniform(keys[9], (L, D2), jnp.float32, -bound2, bound2)

    out2 = jax.block_until_ready(highway_pallas(x2, wg2, bg2, wp2, bp2))
    ref2 = highway_ref(x2, wg2, bg2, wp2, bp2)
    assert out2.shape == (B2, S2, D2)
    assert jnp.allclose(out2, ref2, atol=1e-4, rtol=1e-4), "mismatch vs reference (padded)"

    print("KERNEL_OK")
</pallas_src>

<mosaic_0001>
module attributes {stable_mosaic.version = 11 : i64} {
  func.func @highway_kernel(%arg0: i32, %arg1: memref<16x128xf32, #tpu.memory_space<vmem>>, %arg2: memref<2x128x256xf32, #tpu.memory_space<vmem>>, %arg3: memref<2x1x256xf32, #tpu.memory_space<vmem>>, %arg4: memref<16x128xf32, #tpu.memory_space<vmem>>) attributes {dimension_semantics = [#tpu.dimension_semantics<parallel>], iteration_bounds = array<i64: 1>, scalar_prefetch = 0 : i64, scratch_operands = 0 : i64, tpu.core_type = #tpu.core_type<tc>, window_params = [{transform_indices = @transform_0, window_bounds = array<i64: 16, 128>}, {pipeline_mode = #tpu.pipeline_mode<synchronous>, transform_indices = @transform_1, window_bounds = array<i64: 2, 128, 256>}, {pipeline_mode = #tpu.pipeline_mode<synchronous>, transform_indices = @transform_2, window_bounds = array<i64: 2, 1, 256>}, {transform_indices = @transform_3, window_bounds = array<i64: 16, 128>}]} {
    %c0 = arith.constant 0 : index
    %c0_0 = arith.constant 0 : index
    %0 = vector.load %arg1[%c0, %c0_0] : memref<16x128xf32, #tpu.memory_space<vmem>>, vector<16x128xf32>
    %c0_1 = arith.constant 0 : index
    %c0_2 = arith.constant 0 : index
    %c0_3 = arith.constant 0 : index
    %1 = vector.load %arg2[%c0_1, %c0_2, %c0_3] : memref<2x128x256xf32, #tpu.memory_space<vmem>>, vector<1x128x256xf32>
    %2 = vector.shape_cast %1 : vector<1x128x256xf32> to vector<128x256xf32>
    %cst = arith.constant dense<0.000000e+00> : vector<16x256xf32>
    %3 = tpu.matmul %0, %2, %cst {dimension_numbers = #tpu.dot_dimension_numbers<[1], [0], [0], [1], [0, 0, 1, 1], [], []>} : vector<16x128xf32>, vector<128x256xf32>, vector<16x256xf32> -> vector<16x256xf32>
    %c0_4 = arith.constant 0 : index
    %c0_5 = arith.constant 0 : index
    %c0_6 = arith.constant 0 : index
    %4 = vector.load %arg3[%c0_4, %c0_5, %c0_6] : memref<2x1x256xf32, #tpu.memory_space<vmem>>, vector<1x1x256xf32>
    %5 = vector.shape_cast %4 : vector<1x1x256xf32> to vector<1x256xf32>
    %6 = vector.broadcast %5 : vector<1x256xf32> to vector<16x256xf32>
    %7 = arith.addf %3, %6 : vector<16x256xf32>
    %8 = vector.extract_strided_slice %7 {offsets = [0, 0], sizes = [16, 128], strides = [1, 1]} : vector<16x256xf32> to vector<16x128xf32>
    %cst_7 = arith.constant 0.000000e+00 : f32
    %9 = vector.broadcast %cst_7 : f32 to vector<16x128xf32>
    %10 = arith.maximumf %8, %9 : vector<16x128xf32>
    %11 = vector.extract_strided_slice %7 {offsets = [0, 128], sizes = [16, 128], strides = [1, 1]} : vector<16x256xf32> to vector<16x128xf32>
    %12 = arith.negf %11 : vector<16x128xf32>
    %13 = math.exp %12 : vector<16x128xf32>
    %cst_8 = arith.constant 1.000000e+00 : f32
    %14 = vector.broadcast %cst_8 : f32 to vector<16x128xf32>
    %15 = arith.addf %14, %13 : vector<16x128xf32>
    %16 = arith.divf %14, %15 : vector<16x128xf32>
    %17 = arith.subf %10, %0 : vector<16x128xf32>
    %18 = arith.mulf %16, %17 : vector<16x128xf32>
    %19 = arith.addf %0, %18 : vector<16x128xf32>
    %c1 = arith.constant 1 : index
    %c0_9 = arith.constant 0 : index
    %c0_10 = arith.constant 0 : index
    %20 = vector.load %arg2[%c1, %c0_9, %c0_10] : memref<2x128x256xf32, #tpu.memory_space<vmem>>, vector<1x128x256xf32>
    %21 = vector.shape_cast %20 : vector<1x128x256xf32> to vector<128x256xf32>
    %cst_11 = arith.constant dense<0.000000e+00> : vector<16x256xf32>
    %22 = tpu.matmul %19, %21, %cst_11 {dimension_numbers = #tpu.dot_dimension_numbers<[1], [0], [0], [1], [0, 0, 1, 1], [], []>} : vector<16x128xf32>, vector<128x256xf32>, vector<16x256xf32> -> vector<16x256xf32>
    %c1_12 = arith.constant 1 : index
    %c0_13 = arith.constant 0 : index
    %c0_14 = arith.constant 0 : index
    %23 = vector.load %arg3[%c1_12, %c0_13, %c0_14] : memref<2x1x256xf32, #tpu.memory_space<vmem>>, vector<1x1x256xf32>
    %24 = vector.shape_cast %23 : vector<1x1x256xf32> to vector<1x256xf32>
    %25 = vector.broadcast %24 : vector<1x256xf32> to vector<16x256xf32>
    %26 = arith.addf %22, %25 : vector<16x256xf32>
    %27 = vector.extract_strided_slice %26 {offsets = [0, 0], sizes = [16, 128], strides = [1, 1]} : vector<16x256xf32> to vector<16x128xf32>
    %cst_15 = arith.constant 0.000000e+00 : f32
    %28 = vector.broadcast %cst_15 : f32 to vector<16x128xf32>
    %29 = arith.maximumf %27, %28 : vector<16x128xf32>
    %30 = vector.extract_strided_slice %26 {offsets = [0, 128], sizes = [16, 128], strides = [1, 1]} : vector<16x256xf32> to vector<16x128xf32>
    %31 = arith.negf %30 : vector<16x128xf32>
    %32 = math.exp %31 : vector<16x128xf32>
    %cst_16 = arith.constant 1.000000e+00 : f32
    %33 = vector.broadcast %cst_16 : f32 to vector<16x128xf32>
    %34 = arith.addf %33, %32 : vector<16x128xf32>
    %35 = arith.divf %33, %34 : vector<16x128xf32>
    %36 = arith.subf %29, %19 : vector<16x128xf32>
    %37 = arith.mulf %35, %36 : vector<16x128xf32>
    %38 = arith.addf %19, %37 : vector<16x128xf32>
    %c0_17 = arith.constant 0 : index
    %c0_18 = arith.constant 0 : index
    %39 = vector.load %arg4[%c0_17, %c0_18] : memref<16x128xf32, #tpu.memory_space<vmem>>, vector<16x128xf32>
    tpu.vector_store %arg4[%c0_17, %c0_18], %38 {strides = array<i32>} : memref<16x128xf32, #tpu.memory_space<vmem>>, vector<16x128xf32>,
    return
  }
  func.func @transform_0(%arg0: i32) -> (i32, i32) {
    %c0_i32 = arith.constant 0 : i32
    %c0_i32_0 = arith.constant 0 : i32
    return %arg0, %c0_i32 : i32, i32
  }
  func.func @transform_1(%arg0: i32) -> (i32, i32, i32) {
    %c0_i32 = arith.constant 0 : i32
    %c0_i32_0 = arith.constant 0 : i32
    %c0_i32_1 = arith.constant 0 : i32
    %c0_i32_2 = arith.constant 0 : i32
    return %c0_i32, %c0_i32_0, %c0_i32_1 : i32, i32, i32
  }
  func.func @transform_2(%arg0: i32) -> (i32, i32, i32) {
    %c0_i32 = arith.constant 0 : i32
    %c0_i32_0 = arith.constant 0 : i32
    %c0_i32_1 = arith.constant 0 : i32
    %c0_i32_2 = arith.constant 0 : i32
    return %c0_i32, %c0_i32_0, %c0_i32_1 : i32, i32, i32
  }
  func.func @transform_3(%arg0: i32) -> (i32, i32) {
    %c0_i32 = arith.constant 0 : i32
    %c0_i32_0 = arith.constant 0 : i32
    return %arg0, %c0_i32 : i32, i32
  }
}

module attributes {stable_mosaic.version = 11 : i64} {
  func.func @highway_kernel(%arg0: i32, %arg1: memref<16x128xf32, #tpu.memory_space<vmem>>, %arg2: memref<2x128x256xf32, #tpu.memory_space<vmem>>, %arg3: memref<2x1x256xf32, #tpu.memory_space<vmem>>, %arg4: memref<16x128xf32, #tpu.memory_space<vmem>>) attributes {dimension_semantics = [#tpu.dimension_semantics<parallel>], iteration_bounds = array<i64: 1>, scalar_prefetch = 0 : i64, scratch_operands = 0 : i64, tpu.core_type = #tpu.core_type<tc>, window_params = [{transform_indices = @transform_0, window_bounds = array<i64: 16, 128>}, {pipeline_mode = #tpu.pipeline_mode<synchronous>, transform_indices = @transform_1, window_bounds = array<i64: 2, 128, 256>}, {pipeline_mode = #tpu.pipeline_mode<synchronous>, transform_indices = @transform_2, window_bounds = array<i64: 2, 1, 256>}, {transform_indices = @transform_3, window_bounds = array<i64: 16, 128>}]} {
    %c0 = arith.constant 0 : index
    %c0_0 = arith.constant 0 : index
    %0 = vector.load %arg1[%c0, %c0_0] : memref<16x128xf32, #tpu.memory_space<vmem>>, vector<16x128xf32>
    %c0_1 = arith.constant 0 : index
    %c0_2 = arith.constant 0 : index
    %c0_3 = arith.constant 0 : index
    %1 = vector.load %arg2[%c0_1, %c0_2, %c0_3] : memref<2x128x256xf32, #tpu.memory_space<vmem>>, vector<1x128x256xf32>
    %2 = vector.shape_cast %1 : vector<1x128x256xf32> to vector<128x256xf32>
    %cst = arith.constant dense<0.000000e+00> : vector<16x256xf32>
    %3 = tpu.matmul %0, %2, %cst {dimension_numbers = #tpu.dot_dimension_numbers<[1], [0], [0], [1], [0, 0, 1, 1], [], []>} : vector<16x128xf32>, vector<128x256xf32>, vector<16x256xf32> -> vector<16x256xf32>
    %c0_4 = arith.constant 0 : index
    %c0_5 = arith.constant 0 : index
    %c0_6 = arith.constant 0 : index
    %4 = vector.load %arg3[%c0_4, %c0_5, %c0_6] : memref<2x1x256xf32, #tpu.memory_space<vmem>>, vector<1x1x256xf32>
    %5 = vector.shape_cast %4 : vector<1x1x256xf32> to vector<1x256xf32>
    %6 = vector.broadcast %5 : vector<1x256xf32> to vector<16x256xf32>
    %7 = arith.addf %3, %6 : vector<16x256xf32>
    %8 = vector.extract_strided_slice %7 {offsets = [0, 0], sizes = [16, 128], strides = [1, 1]} : vector<16x256xf32> to vector<16x128xf32>
    %cst_7 = arith.constant 0.000000e+00 : f32
    %9 = vector.broadcast %cst_7 : f32 to vector<16x128xf32>
    %10 = arith.maximumf %8, %9 : vector<16x128xf32>
    %11 = vector.extract_strided_slice %7 {offsets = [0, 128], sizes = [16, 128], strides = [1, 1]} : vector<16x256xf32> to vector<16x128xf32>
    %12 = arith.negf %11 : vector<16x128xf32>
    %13 = math.exp %12 : vector<16x128xf32>
    %cst_8 = arith.constant 1.000000e+00 : f32
    %14 = vector.broadcast %cst_8 : f32 to vector<16x128xf32>
    %15 = arith.addf %14, %13 : vector<16x128xf32>
    %16 = arith.divf %14, %15 : vector<16x128xf32>
    %17 = arith.subf %10, %0 : vector<16x128xf32>
    %18 = arith.mulf %16, %17 : vector<16x128xf32>
    %19 = arith.addf %0, %18 : vector<16x128xf32>
    %c1 = arith.constant 1 : index
    %c0_9 = arith.constant 0 : index
    %c0_10 = arith.constant 0 : index
    %20 = vector.load %arg2[%c1, %c0_9, %c0_10] : memref<2x128x256xf32, #tpu.memory_space<vmem>>, vector<1x128x256xf32>
    %21 = vector.shape_cast %20 : vector<1x128x256xf32> to vector<128x256xf32>
    %cst_11 = arith.constant dense<0.000000e+00> : vector<16x256xf32>
    %22 = tpu.matmul %19, %21, %cst_11 {dimension_numbers = #tpu.dot_dimension_numbers<[1], [0], [0], [1], [0, 0, 1, 1], [], []>} : vector<16x128xf32>, vector<128x256xf32>, vector<16x256xf32> -> vector<16x256xf32>
    %c1_12 = arith.constant 1 : index
    %c0_13 = arith.constant 0 : index
    %c0_14 = arith.constant 0 : index
    %23 = vector.load %arg3[%c1_12, %c0_13, %c0_14] : memref<2x1x256xf32, #tpu.memory_space<vmem>>, vector<1x1x256xf32>
    %24 = vector.shape_cast %23 : vector<1x1x256xf32> to vector<1x256xf32>
    %25 = vector.broadcast %24 : vector<1x256xf32> to vector<16x256xf32>
    %26 = arith.addf %22, %25 : vector<16x256xf32>
    %27 = vector.extract_strided_slice %26 {offsets = [0, 0], sizes = [16, 128], strides = [1, 1]} : vector<16x256xf32> to vector<16x128xf32>
    %cst_15 = arith.constant 0.000000e+00 : f32
    %28 = vector.broadcast %cst_15 : f32 to vector<16x128xf32>
    %29 = arith.maximumf %27, %28 : vector<16x128xf32>
    %30 = vector.extract_strided_slice %26 {offsets = [0, 128], sizes = [16, 128], strides = [1, 1]} : vector<16x256xf32> to vector<16x128xf32>
    %31 = arith.negf %30 : vector<16x128xf32>
    %32 = math.exp %31 : vector<16x128xf32>
    %cst_16 = arith.constant 1.000000e+00 : f32
    %33 = vector.broadcast %cst_16 : f32 to vector<16x128xf32>
    %34 = arith.addf %33, %32 : vector<16x128xf32>
    %35 = arith.divf %33, %34 : vector<16x128xf32>
    %36 = arith.subf %29, %19 : vector<16x128xf32>
    %37 = arith.mulf %35, %36 : vector<16x128xf32>
    %38 = arith.addf %19, %37 : vector<16x128xf32>
    %c0_17 = arith.constant 0 : index
    %c0_18 = arith.constant 0 : index
    %39 = vector.load %arg4[%c0_17, %c0_18] : memref<16x128xf32, #tpu.memory_space<vmem>>, vector<16x128xf32>
    tpu.vector_store %arg4[%c0_17, %c0_18], %38 {strides = array<i32>} : memref<16x128xf32, #tpu.memory_space<vmem>>, vector<16x128xf32>,
    return
  }
  func.func @transform_0(%arg0: i32) -> (i32, i32) {
    %c0_i32 = arith.constant 0 : i32
    %c0_i32_0 = arith.constant 0 : i32
    return %arg0, %c0_i32 : i32, i32
  }
  func.func @transform_1(%arg0: i32) -> (i32, i32, i32) {
    %c0_i32 = arith.constant 0 : i32
    %c0_i32_0 = arith.constant 0 : i32
    %c0_i32_1 = arith.constant 0 : i32
    %c0_i32_2 = arith.constant 0 : i32
    return %c0_i32, %c0_i32_0, %c0_i32_1 : i32, i32, i32
  }
  func.func @transform_2(%arg0: i32) -> (i32, i32, i32) {
    %c0_i32 = arith.constant 0 : i32
    %c0_i32_0 = arith.constant 0 : i32
    %c0_i32_1 = arith.constant 0 : i32
    %c0_i32_2 = arith.constant 0 : i32
    return %c0_i32, %c0_i32_0, %c0_i32_1 : i32, i32, i32
  }
  func.func @transform_3(%arg0: i32) -> (i32, i32) {
    %c0_i32 = arith.constant 0 : i32
    %c0_i32_0 = arith.constant 0 : i32
    return %arg0, %c0_i32 : i32, i32
  }
}

</mosaic_0001>

<llo_original>
// kernel: _highway_fwd.1
$region0: #{_highway_fwd.1}
  #allocation0 [shape = 'u32[]', space=smem, size = 0x4, offset = 0x4, fixed_abs, tag = 'smem constant byte address 0x4 - core index']
  #allocation1 [shape = 'u32[144,128]{1,0:T(1,128)}', space=vmem, size = 0x12000, scoped, tag = 'internal scratch']
  %s0 = inlined_call_operand.vmem [shape: f32[16,128], index: 0, kind: input, shape index: {}]
  %s1 = inlined_call_operand.vmem [shape: f32[2,128,256], index: 1, kind: input, shape index: {}]
  %s2 = inlined_call_operand.vmem [shape: f32[2,1,256], index: 2, kind: input, shape index: {}]
  %s3 = inlined_call_operand.vmem [shape: f32[16,128], index: 3, kind: output, shape index: {}]
  %s4 = sld [smem:[#allocation0]]
  $region22: #{_highway_fwd.1} parent=0
    _
  %s6 = ssub.s32 1, %s4
  %s7 = scalar_select 0, %s6, %s4
  // Predicated region
  $region2: #{_highway_fwd.1} parent=0 // pred_check
    _
  $region3: #{_highway_fwd.1} parent=0 // pred_check_branch
    %9 = sbr.rel (0) target = $region5
  $region4: #{_highway_fwd.1} parent=0 // pred_region
    _
  $region5: #{_highway_fwd.1} parent=0 // pred_fallthru
    _
  // Predicated region
  $region6: #{_highway_fwd.1} parent=0 // pred_check
    _
  $region7: #{_highway_fwd.1} parent=0 // pred_check_branch
    %11 = sbr.rel (0) target = $region9
  $region8: #{_highway_fwd.1} parent=0 // pred_region
    _
  $region9: #{_highway_fwd.1} parent=0 // pred_fallthru
    _
  // Predicated region
  $region10: #{_highway_fwd.1} parent=0 // pred_check
    _
  $region11: #{_highway_fwd.1} parent=0 // pred_check_branch
    %13 = sbr.rel (0) target = $region13
  $region12: #{_highway_fwd.1} parent=0 // pred_region
    _
  $region13: #{_highway_fwd.1} parent=0 // pred_fallthru
    _
  %v14 = vld [vmem:[%s0] sm:$0xff]
  %v15 = vld [vmem:[%s0 + $0x8] sm:$0xff]
  %v16 = vld [vmem:[%s1] sm:$0xff]
  %v17 = vld [vmem:[%s1 + $0x8] sm:$0xff]
  %v18 = vld [vmem:[%s1 + $0x10] sm:$0xff]
  %v19 = vld [vmem:[%s1 + $0x18] sm:$0xff]
  %v20 = vld [vmem:[%s1 + $0x20] sm:$0xff]
  %v21 = vld [vmem:[%s1 + $0x28] sm:$0xff]
  %v22 = vld [vmem:[%s1 + $0x30] sm:$0xff]
  %v23 = vld [vmem:[%s1 + $0x38] sm:$0xff]
  %v24 = vld [vmem:[%s1 + $0x40] sm:$0xff]
  %v25 = vld [vmem:[%s1 + $0x48] sm:$0xff]
  %v26 = vld [vmem:[%s1 + $0x50] sm:$0xff]
  %v27 = vld [vmem:[%s1 + $0x58] sm:$0xff]
  %v28 = vld [vmem:[%s1 + $0x60] sm:$0xff]
  %v29 = vld [vmem:[%s1 + $0x68] sm:$0xff]
  %v30 = vld [vmem:[%s1 + $0x70] sm:$0xff]
  %v31 = vld [vmem:[%s1 + $0x78] sm:$0xff]
  %v32 = vld [vmem:[%s1 + $0x80] sm:$0xff]
  %v33 = vld [vmem:[%s1 + $0x88] sm:$0xff]
  %v34 = vld [vmem:[%s1 + $0x90] sm:$0xff]
  %v35 = vld [vmem:[%s1 + $0x98] sm:$0xff]
  %v36 = vld [vmem:[%s1 + $0xa0] sm:$0xff]
  %v37 = vld [vmem:[%s1 + $0xa8] sm:$0xff]
  %v38 = vld [vmem:[%s1 + $0xb0] sm:$0xff]
  %v39 = vld [vmem:[%s1 + $0xb8] sm:$0xff]
  %v40 = vld [vmem:[%s1 + $0xc0] sm:$0xff]
  %v41 = vld [vmem:[%s1 + $0xc8] sm:$0xff]
  %v42 = vld [vmem:[%s1 + $0xd0] sm:$0xff]
  %v43 = vld [vmem:[%s1 + $0xd8] sm:$0xff]
  %v44 = vld [vmem:[%s1 + $0xe0] sm:$0xff]
  %v45 = vld [vmem:[%s1 + $0xe8] sm:$0xff]
  %v46 = vld [vmem:[%s1 + $0xf0] sm:$0xff]
  %v47 = vld [vmem:[%s1 + $0xf8] sm:$0xff]
  %v48 = vld [vmem:[%s2] sm:$0x3]
  %v50 = vlaneseq
  %v51 = vshrl.u32 %v50, 7
  %v52 = vsub.s32 0, %v51
  %v53 = vrot.slane %v48, %v52
  %v54 = vlaneseq
  %v55 = vshrl.u32 %v54, 7
  %v56 = vsub.s32 1, %v55
  %v57 = vrot.slane %v48, %v56
  %60 = vmatprep.subr.mxu0 %v17
  %61 = vmatpush1.msra.mxu0 %v16
  %62 = vmatprep.subr.mxu0 %v19
  %63 = vmatpush1.msra.mxu0 %v18
  %64 = vmatprep.subr.mxu0 %v21
  %65 = vmatpush1.msra.mxu0 %v20
  %66 = vmatprep.subr.mxu0 %v23
  %67 = vmatpush1.msra.mxu0 %v22
  %68 = vmatprep.subr.mxu0 %v25
  %69 = vmatpush1.msra.mxu0 %v24
  %70 = vmatprep.subr.mxu0 %v27
  %71 = vmatpush1.msra.mxu0 %v26
  %72 = vmatprep.subr.mxu0 %v29
  %73 = vmatpush1.msra.mxu0 %v28
  %74 = vmatprep.subr.mxu0 %v31
  %75 = vmatpush1.msra.mxu0 %v30
  %76 = vmatprep.subr.mxu0 %v33
  %77 = vmatpush1.msra.mxu0 %v32
  %78 = vmatprep.subr.mxu0 %v35
  %79 = vmatpush1.msra.mxu0 %v34
  %80 = vmatprep.subr.mxu0 %v37
  %81 = vmatpush1.msra.mxu0 %v36
  %82 = vmatprep.subr.mxu0 %v39
  %83 = vmatpush1.msra.mxu0 %v38
  %84 = vmatprep.subr.mxu0 %v41
  %85 = vmatpush1.msra.mxu0 %v40
  %86 = vmatprep.subr.mxu0 %v43
  %87 = vmatpush1.msra.mxu0 %v42
  %88 = vmatprep.subr.mxu0 %v45
  %89 = vmatpush1.msra.mxu0 %v44
  %90 = vmatprep.subr.mxu0 %v47
  %91 = vmatpush1.msra.mxu0 %v46
  %92 = vmatprep.subr.mxu0 0.0
  %93 = vmatpush1.msra.mxu0 0.0
  %94 = vmatprep.subr.mxu0 0.0
  %95 = vmatpush1.msra.mxu0 0.0
  %96 = vmatprep.subr.mxu0 0.0
  %97 = vmatpush1.msra.mxu0 0.0
  %98 = vmatprep.subr.mxu0 0.0
  %99 = vmatpush1.msra.mxu0 0.0
  %100 = vmatprep.subr.mxu0 0.0
  %101 = vmatpush1.msra.mxu0 0.0
  %102 = vmatprep.subr.mxu0 0.0
  %103 = vmatpush1.msra.mxu0 0.0
  %104 = vmatprep.subr.mxu0 0.0
  %105 = vmatpush1.msra.mxu0 0.0
  %106 = vmatprep.subr.mxu0 0.0
  %107 = vmatpush1.msra.mxu0 0.0
  %108 = vmatprep.subr.mxu0 0.0
  %109 = vmatpush1.msra.mxu0 0.0
  %110 = vmatprep.subr.mxu0 0.0
  %111 = vmatpush1.msra.mxu0 0.0
  %112 = vmatprep.subr.mxu0 0.0
  %113 = vmatpush1.msra.mxu0 0.0
  %114 = vmatprep.subr.mxu0 0.0
  %115 = vmatpush1.msra.mxu0 0.0
  %116 = vmatprep.subr.mxu0 0.0
  %117 = vmatpush1.msra.mxu0 0.0
  %118 = vmatprep.subr.mxu0 0.0
  %119 = vmatpush1.msra.mxu0 0.0
  %120 = vmatprep.subr.mxu0 0.0
  %121 = vmatpush1.msra.mxu0 0.0
  %122 = vmatprep.subr.mxu0 0.0
  %123 = vmatpush1.msra.mxu0 0.0
  %124 = vmatprep.mubr.f32.mxu0 0.0
  %125 = vmatmul.mubr.f32.gmra.mrb[0].mxu0 %v14
  %v126 = vpop.f32.mrb[0].mxu0
  %v127 = vadd.f32 %v53, %v126
  %v128 = vpop.f32.mrb[0].mxu0
  %v129 = vadd.f32 %v57, %v128
  %130 = vmatprep.mubr.f32.mxu0 0.0
  %131 = vmatmul.mubr.f32.gmra.mrb[0].mxu0 %v15
  %v132 = vpop.f32.mrb[0].mxu0
  %v133 = vadd.f32 %v53, %v132
  %v134 = vpop.f32.mrb[0].mxu0
  %v135 = vadd.f32 %v57, %v134
  %136 = vdwg.mxu0
  %v137 = vmax.f32 %v127, 0.0
  %v138 = vmax.f32 %v133, 0.0
  %v139 = vxor.u32 %v129, 2147483648
  %v140 = vxor.u32 %v135, 2147483648
  %v141 = vmul.f32 %v139, 1.442695
  %v142 = vpow.pop %v141
  %v143 = vmul.f32 %v140, 1.442695
  %v144 = vpow.pop %v143
  %v145 = vadd.f32 %v142, 1.0
  %v146 = vadd.f32 %v144, 1.0
  %v147 = vrcp.pop %v145
  %v148 = vmul.f32 1.0, %v147
  %v149 = vrcp.pop %v146
  %v150 = vmul.f32 1.0, %v149
  %v151 = vsub.f32 %v137, %v14
  %v152 = vsub.f32 %v138, %v15
  %v153 = vmul.f32 %v148, %v151
  %v154 = vmul.f32 %v150, %v152
  %v155 = vadd.f32 %v14, %v153
  %v156 = vadd.f32 %v15, %v154
  %s157 = scalar_lea.vmem %s1, 256
  %v158 = vld [vmem:[%s157] sm:$0xff]
  %v159 = vld [vmem:[%s157 + $0x8] sm:$0xff]
  %v160 = vld [vmem:[%s157 + $0x10] sm:$0xff]
  %v161 = vld [vmem:[%s157 + $0x18] sm:$0xff]
  %v162 = vld [vmem:[%s157 + $0x20] sm:$0xff]
  %v163 = vld [vmem:[%s157 + $0x28] sm:$0xff]
  %v164 = vld [vmem:[%s157 + $0x30] sm:$0xff]
  %v165 = vld [vmem:[%s157 + $0x38] sm:$0xff]
  %v166 = vld [vmem:[%s157 + $0x40] sm:$0xff]
  %v167 = vld [vmem:[%s157 + $0x48] sm:$0xff]
  %v168 = vld [vmem:[%s157 + $0x50] sm:$0xff]
  %v169 = vld [vmem:[%s157 + $0x58] sm:$0xff]
  %v170 = vld [vmem:[%s157 + $0x60] sm:$0xff]
  %v171 = vld [vmem:[%s157 + $0x68] sm:$0xff]
  %v172 = vld [vmem:[%s157 + $0x70] sm:$0xff]
  %v173 = vld [vmem:[%s157 + $0x78] sm:$0xff]
  %v174 = vld [vmem:[%s157 + $0x80] sm:$0xff]
  %v175 = vld [vmem:[%s157 + $0x88] sm:$0xff]
  %v176 = vld [vmem:[%s157 + $0x90] sm:$0xff]
  %v177 = vld [vmem:[%s157 + $0x98] sm:$0xff]
  %v178 = vld [vmem:[%s157 + $0xa0] sm:$0xff]
  %v179 = vld [vmem:[%s157 + $0xa8] sm:$0xff]
  %v180 = vld [vmem:[%s157 + $0xb0] sm:$0xff]
  %v181 = vld [vmem:[%s157 + $0xb8] sm:$0xff]
  %v182 = vld [vmem:[%s157 + $0xc0] sm:$0xff]
  %v183 = vld [vmem:[%s157 + $0xc8] sm:$0xff]
  %v184 = vld [vmem:[%s157 + $0xd0] sm:$0xff]
  %v185 = vld [vmem:[%s157 + $0xd8] sm:$0xff]
  %v186 = vld [vmem:[%s157 + $0xe0] sm:$0xff]
  %v187 = vld [vmem:[%s157 + $0xe8] sm:$0xff]
  %v188 = vld [vmem:[%s157 + $0xf0] sm:$0xff]
  %v189 = vld [vmem:[%s157 + $0xf8] sm:$0xff]
  %s190 = scalar_lea.vmem %s2, 2
  %v191 = vld [vmem:[%s190] sm:$0x3]
  %v193 = vlaneseq
  %v194 = vshrl.u32 %v193, 7
  %v195 = vsub.s32 0, %v194
  %v196 = vrot.slane %v191, %v195
  %v197 = vlaneseq
  %v198 = vshrl.u32 %v197, 7
  %v199 = vsub.s32 1, %v198
  %v200 = vrot.slane %v191, %v199
  %203 = vmatprep.subr.mxu0 %v159
  %204 = vmatpush1.msra.mxu0 %v158
  %205 = vmatprep.subr.mxu0 %v161
  %206 = vmatpush1.msra.mxu0 %v160
  %207 = vmatprep.subr.mxu0 %v163
  %208 = vmatpush1.msra.mxu0 %v162
  %209 = vmatprep.subr.mxu0 %v165
  %210 = vmatpush1.msra.mxu0 %v164
  %211 = vmatprep.subr.mxu0 %v167
  %212 = vmatpush1.msra.mxu0 %v166
  %213 = vmatprep.subr.mxu0 %v169
  %214 = vmatpush1.msra.mxu0 %v168
  %215 = vmatprep.subr.mxu0 %v171
  %216 = vmatpush1.msra.mxu0 %v170
  %217 = vmatprep.subr.mxu0 %v173
  %218 = vmatpush1.msra.mxu0 %v172
  %219 = vmatprep.subr.mxu0 %v175
  %220 = vmatpush1.msra.mxu0 %v174
  %221 = vmatprep.subr.mxu0 %v177
  %222 = vmatpush1.msra.mxu0 %v176
  %223 = vmatprep.subr.mxu0 %v179
  %224 = vmatpush1.msra.mxu0 %v178
  %225 = vmatprep.subr.mxu0 %v181
  %226 = vmatpush1.msra.mxu0 %v180
  %227 = vmatprep.subr.mxu0 %v183
  %228 = vmatpush1.msra.mxu0 %v182
  %229 = vmatprep.subr.mxu0 %v185
  %230 = vmatpush1.msra.mxu0 %v184
  %231 = vmatprep.subr.mxu0 %v187
  %232 = vmatpush1.msra.mxu0 %v186
  %233 = vmatprep.subr.mxu0 %v189
  %234 = vmatpush1.msra.mxu0 %v188
  %235 = vmatprep.subr.mxu0 0.0
  %236 = vmatpush1.msra.mxu0 0.0
  %237 = vmatprep.subr.mxu0 0.0
  %238 = vmatpush1.msra.mxu0 0.0
  %239 = vmatprep.subr.mxu0 0.0
  %240 = vmatpush1.msra.mxu0 0.0
  %241 = vmatprep.subr.mxu0 0.0
  %242 = vmatpush1.msra.mxu0 0.0
  %243 = vmatprep.subr.mxu0 0.0
  %244 = vmatpush1.msra.mxu0 0.0
  %245 = vmatprep.subr.mxu0 0.0
  %246 = vmatpush1.msra.mxu0 0.0
  %247 = vmatprep.subr.mxu0 0.0
  %248 = vmatpush1.msra.mxu0 0.0
  %249 = vmatprep.subr.mxu0 0.0
  %250 = vmatpush1.msra.mxu0 0.0
  %251 = vmatprep.subr.mxu0 0.0
  %252 = vmatpush1.msra.mxu0 0.0
  %253 = vmatprep.subr.mxu0 0.0
  %254 = vmatpush1.msra.mxu0 0.0
  %255 = vmatprep.subr.mxu0 0.0
  %256 = vmatpush1.msra.mxu0 0.0
  %257 = vmatprep.subr.mxu0 0.0
  %258 = vmatpush1.msra.mxu0 0.0
  %259 = vmatprep.subr.mxu0 0.0
  %260 = vmatpush1.msra.mxu0 0.0
  %261 = vmatprep.subr.mxu0 0.0
  %262 = vmatpush1.msra.mxu0 0.0
  %263 = vmatprep.subr.mxu0 0.0
  %264 = vmatpush1.msra.mxu0 0.0
  %265 = vmatprep.subr.mxu0 0.0
  %266 = vmatpush1.msra.mxu0 0.0
  %267 = vmatprep.mubr.f32.mxu0 0.0
  %268 = vmatmul.mubr.f32.gmra.mrb[0].mxu0 %v155
  %v269 = vpop.f32.mrb[0].mxu0
  %v270 = vadd.f32 %v196, %v269
  %v271 = vpop.f32.mrb[0].mxu0
  %v272 = vadd.f32 %v200, %v271
  %273 = vmatprep.mubr.f32.mxu0 0.0
  %274 = vmatmul.mubr.f32.gmra.mrb[0].mxu0 %v156
  %v275 = vpop.f32.mrb[0].mxu0
  %v276 = vadd.f32 %v196, %v275
  %v277 = vpop.f32.mrb[0].mxu0
  %v278 = vadd.f32 %v200, %v277
  %279 = vdwg.mxu0
  %v280 = vmax.f32 %v270, 0.0
  %v281 = vmax.f32 %v276, 0.0
  %v282 = vxor.u32 %v272, 2147483648
  %v283 = vxor.u32 %v278, 2147483648
  %v284 = vmul.f32 %v282, 1.442695
  %v285 = vpow.pop %v284
  %v286 = vmul.f32 %v283, 1.442695
  %v287 = vpow.pop %v286
  %v288 = vadd.f32 %v285, 1.0
  %v289 = vadd.f32 %v287, 1.0
  %v290 = vrcp.pop %v288
  %v291 = vmul.f32 1.0, %v290
  %v292 = vrcp.pop %v289
  %v293 = vmul.f32 1.0, %v292
  %v294 = vsub.f32 %v280, %v155
  %v295 = vsub.f32 %v281, %v156
  %v296 = vmul.f32 %v291, %v294
  %v297 = vmul.f32 %v293, %v295
  %v298 = vadd.f32 %v155, %v296
  %v299 = vadd.f32 %v156, %v297
  %300 = vst [vmem:[%s3] sm:$0xff] %v298
  %301 = vst [vmem:[%s3 + $0x8] sm:$0xff] %v299
  // Predicated region
  $region14: #{_highway_fwd.1} parent=0 // pred_check
    _
  $region15: #{_highway_fwd.1} parent=0 // pred_check_branch
    %303 = sbr.rel (0) target = $region17
  $region16: #{_highway_fwd.1} parent=0 // pred_region
    _
  $region17: #{_highway_fwd.1} parent=0 // pred_fallthru
    _
  // Predicated region
  $region18: #{_highway_fwd.1} parent=0 // pred_check
    _
  $region19: #{_highway_fwd.1} parent=0 // pred_check_branch
    %305 = sbr.rel (0) target = $region21
  $region20: #{_highway_fwd.1} parent=0 // pred_region
    _
  $region21: #{_highway_fwd.1} parent=0 // pred_fallthru
    _

// kernel: _highway_fwd.1
$region0: #{_highway_fwd.1}
  #allocation0 [shape = 'u32[]', space=smem, size = 0x4, offset = 0x4, fixed_abs, tag = 'smem constant byte address 0x4 - core index']
  #allocation1 [shape = 'u32[144,128]{1,0:T(1,128)}', space=vmem, size = 0x12000, scoped, tag = 'internal scratch']
  %s0 = inlined_call_operand.vmem [shape: f32[16,128], index: 0, kind: input, shape index: {}]
  %s1 = inlined_call_operand.vmem [shape: f32[2,128,256], index: 1, kind: input, shape index: {}]
  %s2 = inlined_call_operand.vmem [shape: f32[2,1,256], index: 2, kind: input, shape index: {}]
  %s3 = inlined_call_operand.vmem [shape: f32[16,128], index: 3, kind: output, shape index: {}]
  %s4 = sld [smem:[#allocation0]]
  $region22: #{_highway_fwd.1} parent=0
    _
  %s6 = ssub.s32 1, %s4
  %s7 = scalar_select 0, %s6, %s4
  // Predicated region
  $region2: #{_highway_fwd.1} parent=0 // pred_check
    _
  $region3: #{_highway_fwd.1} parent=0 // pred_check_branch
    %9 = sbr.rel (0) target = $region5
  $region4: #{_highway_fwd.1} parent=0 // pred_region
    _
  $region5: #{_highway_fwd.1} parent=0 // pred_fallthru
    _
  // Predicated region
  $region6: #{_highway_fwd.1} parent=0 // pred_check
    _
  $region7: #{_highway_fwd.1} parent=0 // pred_check_branch
    %11 = sbr.rel (0) target = $region9
  $region8: #{_highway_fwd.1} parent=0 // pred_region
    _
  $region9: #{_highway_fwd.1} parent=0 // pred_fallthru
    _
  // Predicated region
  $region10: #{_highway_fwd.1} parent=0 // pred_check
    _
  $region11: #{_highway_fwd.1} parent=0 // pred_check_branch
    %13 = sbr.rel (0) target = $region13
  $region12: #{_highway_fwd.1} parent=0 // pred_region
    _
  $region13: #{_highway_fwd.1} parent=0 // pred_fallthru
    _
  %v14 = vld [vmem:[%s0] sm:$0xff]
  %v15 = vld [vmem:[%s0 + $0x8] sm:$0xff]
  %v16 = vld [vmem:[%s1] sm:$0xff]
  %v17 = vld [vmem:[%s1 + $0x8] sm:$0xff]
  %v18 = vld [vmem:[%s1 + $0x10] sm:$0xff]
  %v19 = vld [vmem:[%s1 + $0x18] sm:$0xff]
  %v20 = vld [vmem:[%s1 + $0x20] sm:$0xff]
  %v21 = vld [vmem:[%s1 + $0x28] sm:$0xff]
  %v22 = vld [vmem:[%s1 + $0x30] sm:$0xff]
  %v23 = vld [vmem:[%s1 + $0x38] sm:$0xff]
  %v24 = vld [vmem:[%s1 + $0x40] sm:$0xff]
  %v25 = vld [vmem:[%s1 + $0x48] sm:$0xff]
  %v26 = vld [vmem:[%s1 + $0x50] sm:$0xff]
  %v27 = vld [vmem:[%s1 + $0x58] sm:$0xff]
  %v28 = vld [vmem:[%s1 + $0x60] sm:$0xff]
  %v29 = vld [vmem:[%s1 + $0x68] sm:$0xff]
  %v30 = vld [vmem:[%s1 + $0x70] sm:$0xff]
  %v31 = vld [vmem:[%s1 + $0x78] sm:$0xff]
  %v32 = vld [vmem:[%s1 + $0x80] sm:$0xff]
  %v33 = vld [vmem:[%s1 + $0x88] sm:$0xff]
  %v34 = vld [vmem:[%s1 + $0x90] sm:$0xff]
  %v35 = vld [vmem:[%s1 + $0x98] sm:$0xff]
  %v36 = vld [vmem:[%s1 + $0xa0] sm:$0xff]
  %v37 = vld [vmem:[%s1 + $0xa8] sm:$0xff]
  %v38 = vld [vmem:[%s1 + $0xb0] sm:$0xff]
  %v39 = vld [vmem:[%s1 + $0xb8] sm:$0xff]
  %v40 = vld [vmem:[%s1 + $0xc0] sm:$0xff]
  %v41 = vld [vmem:[%s1 + $0xc8] sm:$0xff]
  %v42 = vld [vmem:[%s1 + $0xd0] sm:$0xff]
  %v43 = vld [vmem:[%s1 + $0xd8] sm:$0xff]
  %v44 = vld [vmem:[%s1 + $0xe0] sm:$0xff]
  %v45 = vld [vmem:[%s1 + $0xe8] sm:$0xff]
  %v46 = vld [vmem:[%s1 + $0xf0] sm:$0xff]
  %v47 = vld [vmem:[%s1 + $0xf8] sm:$0xff]
  %v48 = vld [vmem:[%s2] sm:$0x3]
  %v50 = vlaneseq
  %v51 = vshrl.u32 %v50, 7
  %v52 = vsub.s32 0, %v51
  %v53 = vrot.slane %v48, %v52
  %v54 = vlaneseq
  %v55 = vshrl.u32 %v54, 7
  %v56 = vsub.s32 1, %v55
  %v57 = vrot.slane %v48, %v56
  %60 = vmatprep.subr.mxu0 %v17
  %61 = vmatpush1.msra.mxu0 %v16
  %62 = vmatprep.subr.mxu0 %v19
  %63 = vmatpush1.msra.mxu0 %v18
  %64 = vmatprep.subr.mxu0 %v21
  %65 = vmatpush1.msra.mxu0 %v20
  %66 = vmatprep.subr.mxu0 %v23
  %67 = vmatpush1.msra.mxu0 %v22
  %68 = vmatprep.subr.mxu0 %v25
  %69 = vmatpush1.msra.mxu0 %v24
  %70 = vmatprep.subr.mxu0 %v27
  %71 = vmatpush1.msra.mxu0 %v26
  %72 = vmatprep.subr.mxu0 %v29
  %73 = vmatpush1.msra.mxu0 %v28
  %74 = vmatprep.subr.mxu0 %v31
  %75 = vmatpush1.msra.mxu0 %v30
  %76 = vmatprep.subr.mxu0 %v33
  %77 = vmatpush1.msra.mxu0 %v32
  %78 = vmatprep.subr.mxu0 %v35
  %79 = vmatpush1.msra.mxu0 %v34
  %80 = vmatprep.subr.mxu0 %v37
  %81 = vmatpush1.msra.mxu0 %v36
  %82 = vmatprep.subr.mxu0 %v39
  %83 = vmatpush1.msra.mxu0 %v38
  %84 = vmatprep.subr.mxu0 %v41
  %85 = vmatpush1.msra.mxu0 %v40
  %86 = vmatprep.subr.mxu0 %v43
  %87 = vmatpush1.msra.mxu0 %v42
  %88 = vmatprep.subr.mxu0 %v45
  %89 = vmatpush1.msra.mxu0 %v44
  %90 = vmatprep.subr.mxu0 %v47
  %91 = vmatpush1.msra.mxu0 %v46
  %92 = vmatprep.subr.mxu0 0.0
  %93 = vmatpush1.msra.mxu0 0.0
  %94 = vmatprep.subr.mxu0 0.0
  %95 = vmatpush1.msra.mxu0 0.0
  %96 = vmatprep.subr.mxu0 0.0
  %97 = vmatpush1.msra.mxu0 0.0
  %98 = vmatprep.subr.mxu0 0.0
  %99 = vmatpush1.msra.mxu0 0.0
  %100 = vmatprep.subr.mxu0 0.0
  %101 = vmatpush1.msra.mxu0 0.0
  %102 = vmatprep.subr.mxu0 0.0
  %103 = vmatpush1.msra.mxu0 0.0
  %104 = vmatprep.subr.mxu0 0.0
  %105 = vmatpush1.msra.mxu0 0.0
  %106 = vmatprep.subr.mxu0 0.0
  %107 = vmatpush1.msra.mxu0 0.0
  %108 = vmatprep.subr.mxu0 0.0
  %109 = vmatpush1.msra.mxu0 0.0
  %110 = vmatprep.subr.mxu0 0.0
  %111 = vmatpush1.msra.mxu0 0.0
  %112 = vmatprep.subr.mxu0 0.0
  %113 = vmatpush1.msra.mxu0 0.0
  %114 = vmatprep.subr.mxu0 0.0
  %115 = vmatpush1.msra.mxu0 0.0
  %116 = vmatprep.subr.mxu0 0.0
  %117 = vmatpush1.msra.mxu0 0.0
  %118 = vmatprep.subr.mxu0 0.0
  %119 = vmatpush1.msra.mxu0 0.0
  %120 = vmatprep.subr.mxu0 0.0
  %121 = vmatpush1.msra.mxu0 0.0
  %122 = vmatprep.subr.mxu0 0.0
  %123 = vmatpush1.msra.mxu0 0.0
  %124 = vmatprep.mubr.f32.mxu0 0.0
  %125 = vmatmul.mubr.f32.gmra.mrb[0].mxu0 %v14
  %v126 = vpop.f32.mrb[0].mxu0
  %v127 = vadd.f32 %v53, %v126
  %v128 = vpop.f32.mrb[0].mxu0
  %v129 = vadd.f32 %v57, %v128
  %130 = vmatprep.mubr.f32.mxu0 0.0
  %131 = vmatmul.mubr.f32.gmra.mrb[0].mxu0 %v15
  %v132 = vpop.f32.mrb[0].mxu0
  %v133 = vadd.f32 %v53, %v132
  %v134 = vpop.f32.mrb[0].mxu0
  %v135 = vadd.f32 %v57, %v134
  %136 = vdwg.mxu0
  %v137 = vmax.f32 %v127, 0.0
  %v138 = vmax.f32 %v133, 0.0
  %v139 = vxor.u32 %v129, 2147483648
  %v140 = vxor.u32 %v135, 2147483648
  %v141 = vmul.f32 %v139, 1.442695
  %v142 = vpow.pop %v141
  %v143 = vmul.f32 %v140, 1.442695
  %v144 = vpow.pop %v143
  %v145 = vadd.f32 %v142, 1.0
  %v146 = vadd.f32 %v144, 1.0
  %v147 = vrcp.pop %v145
  %v148 = vmul.f32 1.0, %v147
  %v149 = vrcp.pop %v146
  %v150 = vmul.f32 1.0, %v149
  %v151 = vsub.f32 %v137, %v14
  %v152 = vsub.f32 %v138, %v15
  %v153 = vmul.f32 %v148, %v151
  %v154 = vmul.f32 %v150, %v152
  %v155 = vadd.f32 %v14, %v153
  %v156 = vadd.f32 %v15, %v154
  %s157 = scalar_lea.vmem %s1, 256
  %v158 = vld [vmem:[%s157] sm:$0xff]
  %v159 = vld [vmem:[%s157 + $0x8] sm:$0xff]
  %v160 = vld [vmem:[%s157 + $0x10] sm:$0xff]
  %v161 = vld [vmem:[%s157 + $0x18] sm:$0xff]
  %v162 = vld [vmem:[%s157 + $0x20] sm:$0xff]
  %v163 = vld [vmem:[%s157 + $0x28] sm:$0xff]
  %v164 = vld [vmem:[%s157 + $0x30] sm:$0xff]
  %v165 = vld [vmem:[%s157 + $0x38] sm:$0xff]
  %v166 = vld [vmem:[%s157 + $0x40] sm:$0xff]
  %v167 = vld [vmem:[%s157 + $0x48] sm:$0xff]
  %v168 = vld [vmem:[%s157 + $0x50] sm:$0xff]
  %v169 = vld [vmem:[%s157 + $0x58] sm:$0xff]
  %v170 = vld [vmem:[%s157 + $0x60] sm:$0xff]
  %v171 = vld [vmem:[%s157 + $0x68] sm:$0xff]
  %v172 = vld [vmem:[%s157 + $0x70] sm:$0xff]
  %v173 = vld [vmem:[%s157 + $0x78] sm:$0xff]
  %v174 = vld [vmem:[%s157 + $0x80] sm:$0xff]
  %v175 = vld [vmem:[%s157 + $0x88] sm:$0xff]
  %v176 = vld [vmem:[%s157 + $0x90] sm:$0xff]
  %v177 = vld [vmem:[%s157 + $0x98] sm:$0xff]
  %v178 = vld [vmem:[%s157 + $0xa0] sm:$0xff]
  %v179 = vld [vmem:[%s157 + $0xa8] sm:$0xff]
  %v180 = vld [vmem:[%s157 + $0xb0] sm:$0xff]
  %v181 = vld [vmem:[%s157 + $0xb8] sm:$0xff]
  %v182 = vld [vmem:[%s157 + $0xc0] sm:$0xff]
  %v183 = vld [vmem:[%s157 + $0xc8] sm:$0xff]
  %v184 = vld [vmem:[%s157 + $0xd0] sm:$0xff]
  %v185 = vld [vmem:[%s157 + $0xd8] sm:$0xff]
  %v186 = vld [vmem:[%s157 + $0xe0] sm:$0xff]
  %v187 = vld [vmem:[%s157 + $0xe8] sm:$0xff]
  %v188 = vld [vmem:[%s157 + $0xf0] sm:$0xff]
  %v189 = vld [vmem:[%s157 + $0xf8] sm:$0xff]
  %s190 = scalar_lea.vmem %s2, 2
  %v191 = vld [vmem:[%s190] sm:$0x3]
  %v193 = vlaneseq
  %v194 = vshrl.u32 %v193, 7
  %v195 = vsub.s32 0, %v194
  %v196 = vrot.slane %v191, %v195
  %v197 = vlaneseq
  %v198 = vshrl.u32 %v197, 7
  %v199 = vsub.s32 1, %v198
  %v200 = vrot.slane %v191, %v199
  %203 = vmatprep.subr.mxu0 %v159
  %204 = vmatpush1.msra.mxu0 %v158
  %205 = vmatprep.subr.mxu0 %v161
  %206 = vmatpush1.msra.mxu0 %v160
  %207 = vmatprep.subr.mxu0 %v163
  %208 = vmatpush1.msra.mxu0 %v162
  %209 = vmatprep.subr.mxu0 %v165
  %210 = vmatpush1.msra.mxu0 %v164
  %211 = vmatprep.subr.mxu0 %v167
  %212 = vmatpush1.msra.mxu0 %v166
  %213 = vmatprep.subr.mxu0 %v169
  %214 = vmatpush1.msra.mxu0 %v168
  %215 = vmatprep.subr.mxu0 %v171
  %216 = vmatpush1.msra.mxu0 %v170
  %217 = vmatprep.subr.mxu0 %v173
  %218 = vmatpush1.msra.mxu0 %v172
  %219 = vmatprep.subr.mxu0 %v175
  %220 = vmatpush1.msra.mxu0 %v174
  %221 = vmatprep.subr.mxu0 %v177
  %222 = vmatpush1.msra.mxu0 %v176
  %223 = vmatprep.subr.mxu0 %v179
  %224 = vmatpush1.msra.mxu0 %v178
  %225 = vmatprep.subr.mxu0 %v181
  %226 = vmatpush1.msra.mxu0 %v180
  %227 = vmatprep.subr.mxu0 %v183
  %228 = vmatpush1.msra.mxu0 %v182
  %229 = vmatprep.subr.mxu0 %v185
  %230 = vmatpush1.msra.mxu0 %v184
  %231 = vmatprep.subr.mxu0 %v187
  %232 = vmatpush1.msra.mxu0 %v186
  %233 = vmatprep.subr.mxu0 %v189
  %234 = vmatpush1.msra.mxu0 %v188
  %235 = vmatprep.subr.mxu0 0.0
  %236 = vmatpush1.msra.mxu0 0.0
  %237 = vmatprep.subr.mxu0 0.0
  %238 = vmatpush1.msra.mxu0 0.0
  %239 = vmatprep.subr.mxu0 0.0
  %240 = vmatpush1.msra.mxu0 0.0
  %241 = vmatprep.subr.mxu0 0.0
  %242 = vmatpush1.msra.mxu0 0.0
  %243 = vmatprep.subr.mxu0 0.0
  %244 = vmatpush1.msra.mxu0 0.0
  %245 = vmatprep.subr.mxu0 0.0
  %246 = vmatpush1.msra.mxu0 0.0
  %247 = vmatprep.subr.mxu0 0.0
  %248 = vmatpush1.msra.mxu0 0.0
  %249 = vmatprep.subr.mxu0 0.0
  %250 = vmatpush1.msra.mxu0 0.0
  %251 = vmatprep.subr.mxu0 0.0
  %252 = vmatpush1.msra.mxu0 0.0
  %253 = vmatprep.subr.mxu0 0.0
  %254 = vmatpush1.msra.mxu0 0.0
  %255 = vmatprep.subr.mxu0 0.0
  %256 = vmatpush1.msra.mxu0 0.0
  %257 = vmatprep.subr.mxu0 0.0
  %258 = vmatpush1.msra.mxu0 0.0
  %259 = vmatprep.subr.mxu0 0.0
  %260 = vmatpush1.msra.mxu0 0.0
  %261 = vmatprep.subr.mxu0 0.0
  %262 = vmatpush1.msra.mxu0 0.0
  %263 = vmatprep.subr.mxu0 0.0
  %264 = vmatpush1.msra.mxu0 0.0
  %265 = vmatprep.subr.mxu0 0.0
  %266 = vmatpush1.msra.mxu0 0.0
  %267 = vmatprep.mubr.f32.mxu0 0.0
  %268 = vmatmul.mubr.f32.gmra.mrb[0].mxu0 %v155
  %v269 = vpop.f32.mrb[0].mxu0
  %v270 = vadd.f32 %v196, %v269
  %v271 = vpop.f32.mrb[0].mxu0
  %v272 = vadd.f32 %v200, %v271
  %273 = vmatprep.mubr.f32.mxu0 0.0
  %274 = vmatmul.mubr.f32.gmra.mrb[0].mxu0 %v156
  %v275 = vpop.f32.mrb[0].mxu0
  %v276 = vadd.f32 %v196, %v275
  %v277 = vpop.f32.mrb[0].mxu0
  %v278 = vadd.f32 %v200, %v277
  %279 = vdwg.mxu0
  %v280 = vmax.f32 %v270, 0.0
  %v281 = vmax.f32 %v276, 0.0
  %v282 = vxor.u32 %v272, 2147483648
  %v283 = vxor.u32 %v278, 2147483648
  %v284 = vmul.f32 %v282, 1.442695
  %v285 = vpow.pop %v284
  %v286 = vmul.f32 %v283, 1.442695
  %v287 = vpow.pop %v286
  %v288 = vadd.f32 %v285, 1.0
  %v289 = vadd.f32 %v287, 1.0
  %v290 = vrcp.pop %v288
  %v291 = vmul.f32 1.0, %v290
  %v292 = vrcp.pop %v289
  %v293 = vmul.f32 1.0, %v292
  %v294 = vsub.f32 %v280, %v155
  %v295 = vsub.f32 %v281, %v156
  %v296 = vmul.f32 %v291, %v294
  %v297 = vmul.f32 %v293, %v295
  %v298 = vadd.f32 %v155, %v296
  %v299 = vadd.f32 %v156, %v297
  %300 = vst [vmem:[%s3] sm:$0xff] %v298
  %301 = vst [vmem:[%s3 + $0x8] sm:$0xff] %v299
  // Predicated region
  $region14: #{_highway_fwd.1} parent=0 // pred_check
    _
  $region15: #{_highway_fwd.1} parent=0 // pred_check_branch
    %303 = sbr.rel (0) target = $region17
  $region16: #{_highway_fwd.1} parent=0 // pred_region
    _
  $region17: #{_highway_fwd.1} parent=0 // pred_fallthru
    _
  // Predicated region
  $region18: #{_highway_fwd.1} parent=0 // pred_check
    _
  $region19: #{_highway_fwd.1} parent=0 // pred_check_branch
    %305 = sbr.rel (0) target = $region21
  $region20: #{_highway_fwd.1} parent=0 // pred_region
    _
  $region21: #{_highway_fwd.1} parent=0 // pred_fallthru
    _

</llo_original>
